<compile_context>
chip_gen: v7x
topology: tpu7x:2x2x1
jax: 0.10.0
libtpu: 0.0.40
codegen_flags: <defaults>
</compile_context>

<pallas_src>
import functools

import jax
import jax.numpy as jnp
from jax.experimental import pallas as pl
from jax.experimental.pallas import tpu as pltpu

_LANES = 128          # minimum lane width
_MAX_LANES = 1024     # widest slab last-dim we use


def relu_kernel(x_ref, o_ref):
    # Elementwise max(x, 0) on the VPU over the whole VMEM tile.
    # Weak-typed 0 preserves dtype (f32/bf16/int); NaNs propagate like torch.
    o_ref[...] = jnp.maximum(x_ref[...], 0)


@functools.lru_cache(maxsize=None)
def _block_budget():
    """Chip-aware (per-buffer block bytes, vmem_limit_bytes)."""
    try:
        vmem = int(pltpu.get_tpu_info().vmem_capacity_bytes)
    except Exception:
        vmem = 128 << 20  # assume a 128-MiB-VMEM chip if the query fails
    if vmem < (96 << 20):
        # v7x-class: highest HBM BW -> shortest steps -> biggest relative win
        # from large blocks, but only 64 MiB physical VMEM.
        per_buffer = 8 << 20
    else:
        # v5e / v6e (128 MiB VMEM).
        per_buffer = 4 << 20
    # 2 input + 2 output pipelined buffers (<= 32 MiB) + internal scratch,
    # comfortably under 48 MiB on every generation (v7x physical is 64 MiB).
    vmem_limit = 48 << 20
    return per_buffer, vmem_limit


def _pick_lanes(n: int) -> int:
    """Largest multiple of 128 (capped at 1024) dividing n; 0 if misaligned."""
    for lanes in (1024, 512, 256, 128):
        if n % lanes == 0:
            return lanes
    return 0


def _pick_tile_rows(rows: int, lanes: int, itemsize: int, per_buffer: int) -> int:
    """Block row count: ~per_buffer bytes, sublane-packed, >= 4 grid steps."""
    # Packed sublane multiple: 8 for 32-bit, 16 for bf16/f16, 32 for int8/fp8.
    sub = max(8, 32 // max(itemsize, 1))
    if rows <= sub:
        # Block equal to the full array dim is always a legal block shape.
        return rows
    # Target ~per_buffer bytes per block, rounded down to the sublane multiple.
    target = max(sub, (per_buffer // (lanes * itemsize)) // sub * sub)
    # Keep >= 4 grid steps when rows permit (>= 2 per TensorCore on v7x) so
    # each core still pipelines DMA-in / compute / DMA-out.
    quarter = max(sub, (rows // 4) // sub * sub)
    return min(target, quarter)


def _relu_slab(slab: jax.Array, tile_rows: int, vmem_limit: int) -> jax.Array:
    rows, lanes = slab.shape
    grid = (pl.cdiv(rows, tile_rows),)  # partial boundary block handled by Pallas
    return pl.pallas_call(
        relu_kernel,
        out_shape=jax.ShapeDtypeStruct((rows, lanes), slab.dtype),
        grid_spec=pltpu.PrefetchScalarGridSpec(
            num_scalar_prefetch=0,
            grid=grid,
            in_specs=[pl.BlockSpec((tile_rows, lanes), lambda i: (i, 0))],
            out_specs=pl.BlockSpec((tile_rows, lanes), lambda i: (i, 0)),
        ),
        compiler_params=pltpu.CompilerParams(
            dimension_semantics=("parallel",),
            vmem_limit_bytes=vmem_limit,
        ),
    )(slab)


@jax.jit
def relu(x: jax.Array) -> jax.Array:
    """Elementwise ReLU; matches the module's np.maximum(0, x) semantics."""
    # Note: assumes >= 1-byte dtypes; sub-byte (int4/fp4) and bool are untested.
    orig_shape = x.shape
    n = x.size
    if n == 0:
        return x

    itemsize = jnp.dtype(x.dtype).itemsize
    per_buffer, vmem_limit = _block_budget()

    lanes = _pick_lanes(n)
    if lanes:
        # Hot path: reshape (bitcast) -> kernel -> reshape back. No pad/slice.
        rows = n // lanes
        tile_rows = _pick_tile_rows(rows, lanes, itemsize, per_buffer)
        out = _relu_slab(x.reshape(rows, lanes), tile_rows, vmem_limit)
        return out.reshape(orig_shape)

    # Misaligned path (n % 128 != 0): run the fast kernel on the 128-aligned
    # prefix and handle the <=127-element tail with plain jnp (no full-tensor
    # pad + slice passes over HBM).
    flat = x.reshape(-1)
    n_main = (n // _LANES) * _LANES
    tail_out = jnp.maximum(flat[n_main:], 0)
    if n_main == 0:
        # Tiny tensor (< 128 elements): kernel overhead isn't worth it.
        return tail_out.reshape(orig_shape)
    lanes_m = _pick_lanes(n_main)
    rows = n_main // lanes_m
    tile_rows = _pick_tile_rows(rows, lanes_m, itemsize, per_buffer)
    main_out = _relu_slab(
        flat[:n_main].reshape(rows, lanes_m), tile_rows, vmem_limit
    ).reshape(-1)
    return jnp.concatenate([main_out, tail_out]).reshape(orig_shape)


if __name__ == "__main__":
    key = jax.random.PRNGKey(0)
    keys = jax.random.split(key, 3)

    # Small NCHW input consistent with the module's usage.
    x = jax.random.normal(key, (2, 4, 16, 16), dtype=jnp.float32)
    y = jax.block_until_ready(relu(x))
    ref = jnp.maximum(0.0, x)
    assert y.shape == x.shape and y.dtype == x.dtype
    assert jnp.array_equal(y, ref), "ReLU kernel mismatch (aligned path)"

    # Multi-step grid path (rows > sublane multiple -> grid of 4 steps).
    x2 = jax.random.normal(keys[0], (4, 128, 256), dtype=jnp.float32)
    y2 = jax.block_until_ready(relu(x2))
    assert jnp.array_equal(y2, jnp.maximum(0.0, x2)), "ReLU mismatch (grid path)"

    # Misaligned element count (145 % 128 != 0): prefix kernel + jnp tail.
    x3 = jax.random.normal(keys[1], (5, 29), dtype=jnp.float32)
    y3 = jax.block_until_ready(relu(x3))
    assert jnp.array_equal(y3, jnp.maximum(0.0, x3)), "ReLU mismatch (tail path)"

    # bf16 (packed sublane multiple = 16).
    x4 = jax.random.normal(keys[2], (2, 4, 16, 16), dtype=jnp.bfloat16)
    y4 = jax.block_until_ready(relu(x4))
    assert y4.dtype == x4.dtype
    assert jnp.array_equal(y4, jnp.maximum(x4, 0)), "ReLU mismatch (bf16 path)"

    # TODO(synk): backward() (mask * upstream grad) is host-side autograd glue
    # in the original module; only the forward pass is implemented as a kernel.
    print("KERNEL_OK")
</pallas_src>

<mosaic_0001>
module attributes {stable_mosaic.version = 11 : i64} {
  func.func @relu_kernel(%arg0: i32, %arg1: memref<2x1024xf32, #tpu.memory_space<vmem>>, %arg2: memref<2x1024xf32, #tpu.memory_space<vmem>>) attributes {dimension_semantics = [#tpu.dimension_semantics<parallel>], iteration_bounds = array<i64: 1>, scalar_prefetch = 0 : i64, scratch_operands = 0 : i64, tpu.core_type = #tpu.core_type<tc>, window_params = [{transform_indices = @transform_0, window_bounds = array<i64: 2, 1024>}, {transform_indices = @transform_1, window_bounds = array<i64: 2, 1024>}]} {
    %c0 = arith.constant 0 : index
    %c0_0 = arith.constant 0 : index
    %0 = vector.load %arg1[%c0, %c0_0] : memref<2x1024xf32, #tpu.memory_space<vmem>>, vector<2x1024xf32>
    %cst = arith.constant 0.000000e+00 : f32
    %1 = vector.broadcast %cst : f32 to vector<2x1024xf32>
    %2 = arith.maximumf %0, %1 : vector<2x1024xf32>
    %c0_1 = arith.constant 0 : index
    %c0_2 = arith.constant 0 : index
    %3 = vector.load %arg2[%c0_1, %c0_2] : memref<2x1024xf32, #tpu.memory_space<vmem>>, vector<2x1024xf32>
    tpu.vector_store %arg2[%c0_1, %c0_2], %2 {strides = array<i32>} : memref<2x1024xf32, #tpu.memory_space<vmem>>, vector<2x1024xf32>,
    return
  }
  func.func @transform_0(%arg0: i32) -> (i32, i32) {
    %c0_i32 = arith.constant 0 : i32
    %c0_i32_0 = arith.constant 0 : i32
    return %arg0, %c0_i32 : i32, i32
  }
  func.func @transform_1(%arg0: i32) -> (i32, i32) {
    %c0_i32 = arith.constant 0 : i32
    %c0_i32_0 = arith.constant 0 : i32
    return %arg0, %c0_i32 : i32, i32
  }
}

</mosaic_0001>

<llo_original>
// kernel: relu.1
$region0: #{relu.1}
  #allocation0 [shape = 'u32[]', space=smem, size = 0x4, offset = 0x4, fixed_abs, tag = 'smem constant byte address 0x4 - core index']
  #allocation1 [shape = 'u32[144,128]{1,0:T(1,128)}', space=vmem, size = 0x12000, scoped, tag = 'internal scratch']
  %s0 = inlined_call_operand.vmem [shape: f32[2,1024], index: 0, kind: input, shape index: {}]
  %s1 = inlined_call_operand.vmem [shape: f32[2,1024], index: 1, kind: output, shape index: {}]
  %s2 = sld [smem:[#allocation0]]
  $region14: #{relu.1} parent=0
    _
  %s4 = ssub.s32 1, %s2
  %s5 = scalar_select 0, %s4, %s2
  // Predicated region
  $region2: #{relu.1} parent=0 // pred_check
    _
  $region3: #{relu.1} parent=0 // pred_check_branch
    %7 = sbr.rel (0) target = $region5
  $region4: #{relu.1} parent=0 // pred_region
    _
  $region5: #{relu.1} parent=0 // pred_fallthru
    _
  %v8 = vld [vmem:[%s0] sm:$0xff]
  %v9 = vld [vmem:[%s0 + $0x8] sm:$0xff]
  %v10 = vmax.f32 %v8, 0.0
  %v11 = vmax.f32 %v9, 0.0
  %12 = vst [vmem:[%s1] sm:$0xff] %v10
  %13 = vst [vmem:[%s1 + $0x8] sm:$0xff] %v11
  // Predicated region
  $region6: #{relu.1} parent=0 // pred_check
    _
  $region7: #{relu.1} parent=0 // pred_check_branch
    %15 = sbr.rel (0) target = $region9
  $region8: #{relu.1} parent=0 // pred_region
    _
  $region9: #{relu.1} parent=0 // pred_fallthru
    _
  // Predicated region
  $region10: #{relu.1} parent=0 // pred_check
    _
  $region11: #{relu.1} parent=0 // pred_check_branch
    %17 = sbr.rel (0) target = $region13
  $region12: #{relu.1} parent=0 // pred_region
    _
  $region13: #{relu.1} parent=0 // pred_fallthru
    _

</llo_original>
